<compile_context>
chip_gen: v7x
topology: tpu7x:2x2x1
jax: 0.10.0
libtpu: 0.0.40
codegen_flags: <defaults>
</compile_context>

<pallas_src>
import functools
import math

import jax
import jax.numpy as jnp
from jax import lax
from jax.experimental import pallas as pl
from jax.experimental.pallas import tpu as pltpu

NEG_INF = -1e30  # large finite mask value (avoids inf-inf NaNs in the online softmax)


# ----------------------------------------------------------------------------- ALiBi slopes
def get_slopes(n):
    def get_slopes_power_of_2(n):
        start = 2 ** (-(2 ** (-(math.log2(n) - 3))))
        ratio = start
        return [start * ratio ** i for i in range(n)]

    if math.log2(n).is_integer():
        return get_slopes_power_of_2(n)
    closest = 2 ** math.floor(math.log2(n))
    return (get_slopes_power_of_2(closest)
            + get_slopes(2 * closest)[0::2][: n - closest])


# ----------------------------------------------------------------------------- KV-cache scatter
def _store_kvcache_kernel(slot_ref, key_ref, val_ref, kc_in_ref, vc_in_ref,
                          kc_ref, vc_ref, sem_ref, cnt_ref, *, tok_block, num_tokens):
    del kc_in_ref, vc_in_ref  # aliased to kc_ref / vc_ref; only written via DMA below
    b = pl.program_id(0)
    cnt_ref[0] = 0

    # Issue all row DMAs for this token block (no per-token wait -> copies overlap).
    @pl.loop(0, tok_block)
    def _issue(i):
        tok = b * tok_block + i
        slot = slot_ref[jnp.minimum(tok, num_tokens - 1)]
        valid = jnp.logical_and(tok < num_tokens, slot >= 0)

        @pl.when(valid)
        def _():
            pltpu.make_async_copy(key_ref.at[i], kc_ref.at[slot], sem_ref.at[0]).start()
            pltpu.make_async_copy(val_ref.at[i], vc_ref.at[slot], sem_ref.at[1]).start()
            cnt_ref[0] = cnt_ref[0] + 1

    # Drain: all copies have identical shape/dtype, so dummy descriptors with the same
    # shape can be used to wait `count` times on each semaphore.
    def _drain(_, carry):
        pltpu.make_async_copy(key_ref.at[0], kc_ref.at[0], sem_ref.at[0]).wait()
        pltpu.make_async_copy(val_ref.at[0], vc_ref.at[0], sem_ref.at[1]).wait()
        return carry

    lax.fori_loop(0, cnt_ref[0], _drain, 0)


def store_kvcache(key, value, k_cache, v_cache, slot_mapping, *, tok_block=128):
    """key/value: (N, num_kv_heads, head_dim); caches: (num_slots, num_kv_heads, head_dim)."""
    N, kvh, hd = key.shape
    assert key.dtype == k_cache.dtype and value.dtype == v_cache.dtype
    tok_block = min(tok_block, N)
    num_blocks = pl.cdiv(N, tok_block)

    tok_spec = pl.BlockSpec((tok_block, kvh, hd), lambda b, sm: (b, 0, 0))
    any_spec = pl.BlockSpec(memory_space=pl.ANY)

    grid_spec = pltpu.PrefetchScalarGridSpec(
        num_scalar_prefetch=1,
        grid=(num_blocks,),
        in_specs=[tok_spec, tok_spec, any_spec, any_spec],
        out_specs=[any_spec, any_spec],
        scratch_shapes=[pltpu.SemaphoreType.DMA((2,)),
                        pltpu.SMEM((1,), jnp.int32)],
    )
    kernel = functools.partial(_store_kvcache_kernel,
                               tok_block=tok_block, num_tokens=N)
    kc_new, vc_new = pl.pallas_call(
        kernel,
        grid_spec=grid_spec,
        out_shape=(jax.ShapeDtypeStruct(k_cache.shape, k_cache.dtype),
                   jax.ShapeDtypeStruct(v_cache.shape, v_cache.dtype)),
        # indices count the full operand list incl. the scalar-prefetch slot_mapping
        input_output_aliases={3: 0, 4: 1},
        compiler_params=pltpu.CompilerParams(dimension_semantics=("parallel",)),
    )(slot_mapping, key, value, k_cache, v_cache)
    return kc_new, vc_new


# ----------------------------------------------------------------------------- flash attention (prefill)
def _rep_lanes(x, n):
    """Broadcast a (rows, 128) lane-replicated buffer to (rows, n)."""
    if n == 128:
        return x
    if n < 128:
        return x[:, :n]
    if n % 128 == 0:
        return jnp.tile(x, (1, n // 128))
    return jnp.broadcast_to(x[:, :1], (x.shape[0], n))


def _flash_prefill_kernel(slope_ref, q_ref, k_ref, v_ref, o_ref,
                          qs_ref, m_ref, l_ref, acc_ref, *,
                          scale, use_alibi, group, head_dim, tq, tk):
    g = pl.program_id(1)
    qb = pl.program_id(2)
    kb = pl.program_id(3)
    q_start = qb * tq
    k_start = kb * tk

    @pl.when(kb == 0)
    def _init():
        # Fold the softmax scale into q once per q block (native-dtype MXU operand).
        qs_ref[...] = (q_ref[...] * scale).astype(qs_ref.dtype)
        m_ref[...] = jnp.full_like(m_ref, NEG_INF)
        l_ref[...] = jnp.zeros_like(l_ref)
        acc_ref[...] = jnp.zeros_like(acc_ref)

    def _step(masked):
        kt = k_ref[...]                      # (tk, D)  native dtype
        vt = v_ref[...]                      # (tk, D)
        rel_f = None
        causal_ok = None
        if masked or use_alibi:
            # shared across the whole GQA group (computed once per kv step)
            col = lax.broadcasted_iota(jnp.int32, (tq, tk), 1)
            row = lax.broadcasted_iota(jnp.int32, (tq, tk), 0)
            rel_i = col - row + (k_start - q_start)          # k_pos - q_pos
            if use_alibi:
                rel_f = rel_i.astype(jnp.float32)
            if masked:
                causal_ok = rel_i <= 0

        for gi in range(group):
            q_g = qs_ref[:, gi * head_dim:(gi + 1) * head_dim]          # (tq, D)
            s = lax.dot_general(q_g, kt, (((1,), (1,)), ((), ())),
                                preferred_element_type=jnp.float32)      # (tq, tk)
            if use_alibi:
                s = s + slope_ref[g * group + gi] * rel_f
            if masked:
                s = jnp.where(causal_ok, s, NEG_INF)

            m_prev = m_ref[gi]                                           # (tq, 128)
            m_new = jnp.maximum(m_prev, jnp.max(s, axis=-1, keepdims=True))
            alpha = jnp.exp(m_prev - m_new)                              # (tq, 128)
            p = jnp.exp(s - _rep_lanes(m_new, tk))                       # (tq, tk)
            l_ref[gi] = alpha * l_ref[gi] + jnp.sum(p, axis=-1, keepdims=True)
            pv = lax.dot_general(p.astype(vt.dtype), vt, (((1,), (0,)), ((), ())),
                                 preferred_element_type=jnp.float32)     # (tq, D)
            acc_ref[gi] = _rep_lanes(alpha, head_dim) * acc_ref[gi] + pv
            m_ref[gi] = m_new

    needed = k_start <= q_start + (tq - 1)          # not fully above the diagonal
    unmasked = (k_start + (tk - 1)) <= q_start      # fully visible -> no causal select

    @pl.when(jnp.logical_and(needed, unmasked))
    def _interior():
        _step(masked=False)

    @pl.when(jnp.logical_and(needed, jnp.logical_not(unmasked)))
    def _diagonal():
        _step(masked=True)

    @pl.when(kb == pl.num_programs(3) - 1)
    def _finalize():
        for gi in range(group):
            inv_l = pl.reciprocal(l_ref[gi], approx=False)   # exact; once per q block
            o_ref[:, gi * head_dim:(gi + 1) * head_dim] = (
                acc_ref[gi] * _rep_lanes(inv_l, head_dim)).astype(o_ref.dtype)


def flash_attn_varlen(q, k, v, *, seqlen, scale, alibi_slopes,
                      num_heads, num_kv_heads, head_dim,
                      block_q=256, block_k=512):
    """q: (N, H*D), k/v: (N, Hkv*D); sequences are contiguous blocks of `seqlen`.
    Causal prefill with cu_seqlens_k == cu_seqlens_q, GQA, optional ALiBi."""
    N = q.shape[0]
    assert N % seqlen == 0, "uniform-length prefill only"  # TODO(synk): ragged cu_seqlens
    assert num_heads % num_kv_heads == 0
    group = num_heads // num_kv_heads
    # TODO(synk): pack multiple heads per lane block for head_dim < 128.
    assert head_dim % 128 == 0, "lane-dense head_dim (multiple of 128) required"
    num_seqs = N // seqlen

    tq = min(block_q, seqlen)
    # keep the f32 temporaries / accumulators within the default scoped VMEM (v7x: 64 MiB/TC)
    while group * tq > 2048 and tq > 128 and tq % 2 == 0:
        tq //= 2
    tk = min(block_k, seqlen)
    assert seqlen % tq == 0 and seqlen % tk == 0
    assert tq % 8 == 0 and tk % 8 == 0
    q_blocks = seqlen // tq
    kv_blocks = seqlen // tk

    use_alibi = alibi_slopes is not None
    slopes = (jnp.asarray(alibi_slopes, jnp.float32) if use_alibi
              else jnp.zeros((num_heads,), jnp.float32))

    def q_map(s, g, qb, kb, slopes_ref):
        return (s * q_blocks + qb, g)

    def kv_map(s, g, qb, kb, slopes_ref):
        # Clamp fully-masked (above-diagonal) steps onto the last needed KV block so
        # Pallas issues no new DMA for skipped steps.
        last_needed = (qb * tq + (tq - 1)) // tk
        return (s * kv_blocks + jnp.minimum(kb, last_needed), g)

    kernel = functools.partial(_flash_prefill_kernel, scale=scale, use_alibi=use_alibi,
                               group=group, head_dim=head_dim, tq=tq, tk=tk)
    grid_spec = pltpu.PrefetchScalarGridSpec(
        num_scalar_prefetch=1,
        grid=(num_seqs, num_kv_heads, q_blocks, kv_blocks),
        in_specs=[
            pl.BlockSpec((tq, group * head_dim), q_map),   # whole query group, lane-sliced
            pl.BlockSpec((tk, head_dim), kv_map),
            pl.BlockSpec((tk, head_dim), kv_map),
        ],
        out_specs=pl.BlockSpec((tq, group * head_dim), q_map),
        scratch_shapes=[
            pltpu.VMEM((tq, group * head_dim), q.dtype),     # scale-folded q
            pltpu.VMEM((group, tq, 128), jnp.float32),       # running max (lane-replicated)
            pltpu.VMEM((group, tq, 128), jnp.float32),       # running sum (lane-replicated)
            pltpu.VMEM((group, tq, head_dim), jnp.float32),  # output accumulator
        ],
    )
    out = pl.pallas_call(
        kernel,
        grid_spec=grid_spec,
        out_shape=jax.ShapeDtypeStruct((N, num_heads * head_dim), q.dtype),
        compiler_params=pltpu.CompilerParams(
            dimension_semantics=("parallel", "parallel", "parallel", "arbitrary")),
    )(slopes, q, k, v)
    return out


# ----------------------------------------------------------------------------- module
class Attention:
    def __init__(self, layer_id, num_heads, head_dim, is_self_layer, window_size,
                 alibi, scale, num_kv_heads, sparse_decoding, sparse_block_size,
                 sparse_block_ratio, sparse_min_num_blocks, sparse_local_num_blocks):
        self.layer_id = layer_id
        self.is_self_layer = is_self_layer
        self.window_size = window_size
        self.num_heads = num_heads
        self.head_dim = head_dim
        self.scale = scale
        self.num_kv_heads = num_kv_heads
        # single-device stand-in for torch.distributed (tp_size == 1)
        self.tp_rank, self.tp_size = 0, 1
        self.alibi_slopes = (jnp.array(get_slopes(num_heads), dtype=jnp.float32)
                             if alibi else None)
        # TODO(synk): sparse_decoding / KVManager block-sparse decode path not implemented.
        self.kv_manager = None

    def forward(self, q, k, v, k_cache, v_cache, slot_mapping, seqlen,
                block_q=256, block_k=512):
        N = q.shape[0]
        if self.is_self_layer and k_cache.size and v_cache.size:
            # TODO(synk): sliding-window (window_size > 0) slot mapping not modeled.
            k_cache, v_cache = store_kvcache(
                k.reshape(N, self.num_kv_heads, self.head_dim),
                v.reshape(N, self.num_kv_heads, self.head_dim),
                k_cache, v_cache, slot_mapping)

        # Prefill path with cu_seqlens_k == cu_seqlens_q: attend over fresh K/V, causal.
        # TODO(synk): decode paths (flash_attn_with_kvcache / flash_block_sparse_decoding)
        # are not implemented in this synthetic kernel.
        o = flash_attn_varlen(q, k, v, seqlen=seqlen, scale=self.scale,
                              alibi_slopes=self.alibi_slopes,
                              num_heads=self.num_heads,
                              num_kv_heads=self.num_kv_heads,
                              head_dim=self.head_dim,
                              block_q=block_q, block_k=block_k)
        return o, k_cache, v_cache


# ----------------------------------------------------------------------------- demo / check
if __name__ == "__main__":
    num_heads, num_kv_heads, head_dim = 4, 2, 128
    seqlen, num_seqs = 256, 2
    N = seqlen * num_seqs
    num_slots = 1024
    scale = 1.0 / math.sqrt(head_dim)
    # small tiles so the demo exercises multi-block causal skipping + diag/interior split
    block_q = block_k = 128

    rng = jax.random.PRNGKey(0)
    r1, r2, r3 = jax.random.split(rng, 3)
    q = jax.random.normal(r1, (N, num_heads * head_dim), jnp.float32)
    k = jax.random.normal(r2, (N, num_kv_heads * head_dim), jnp.float32)
    v = jax.random.normal(r3, (N, num_kv_heads * head_dim), jnp.float32)
    k_cache = jnp.zeros((num_slots, num_kv_heads, head_dim), jnp.float32)
    v_cache = jnp.zeros((num_slots, num_kv_heads, head_dim), jnp.float32)
    slot_mapping = jnp.arange(N, dtype=jnp.int32) + 4
    slot_mapping = slot_mapping.at[5].set(-1)   # exercise the padding-slot skip

    attn = Attention(layer_id=0, num_heads=num_heads, head_dim=head_dim,
                     is_self_layer=True, window_size=-1, alibi=True, scale=scale,
                     num_kv_heads=num_kv_heads, sparse_decoding=False,
                     sparse_block_size=16, sparse_block_ratio=0.25,
                     sparse_min_num_blocks=1, sparse_local_num_blocks=1)

    o, kc, vc = attn.forward(q, k, v, k_cache, v_cache, slot_mapping, seqlen,
                             block_q=block_q, block_k=block_k)
    jax.block_until_ready((o, kc, vc))

    # ---- pure-JAX reference check: KV-cache scatter ----
    kr = k.reshape(N, num_kv_heads, head_dim)
    vr = v.reshape(N, num_kv_heads, head_dim)
    valid = slot_mapping >= 0
    assert jnp.allclose(kc[slot_mapping[valid]], kr[valid], atol=1e-6)
    assert jnp.allclose(vc[slot_mapping[valid]], vr[valid], atol=1e-6)
    # token 5 was masked (slot -1); its would-be slot (9) must remain untouched (zeros)
    assert not bool(jnp.any(kc[9])) and not bool(jnp.any(vc[9]))

    # ---- pure-JAX reference check: causal GQA + ALiBi attention ----
    qr = q.reshape(N, num_heads, head_dim)
    group = num_heads // num_kv_heads
    slopes = jnp.array(get_slopes(num_heads), jnp.float32)
    refs = []
    for s in range(num_seqs):
        qs = qr[s * seqlen:(s + 1) * seqlen]
        ks = jnp.repeat(kr[s * seqlen:(s + 1) * seqlen], group, axis=1)
        vs = jnp.repeat(vr[s * seqlen:(s + 1) * seqlen], group, axis=1)
        sc = jnp.einsum('qhd,khd->hqk', qs, ks) * scale
        qi = jnp.arange(seqlen)[None, :, None]
        ki = jnp.arange(seqlen)[None, None, :]
        sc = sc + slopes[:, None, None] * (ki - qi)
        sc = jnp.where(ki <= qi, sc, -jnp.inf)
        p = jax.nn.softmax(sc, axis=-1)
        refs.append(jnp.einsum('hqk,khd->qhd', p, vs))
    o_ref = jnp.concatenate(refs, axis=0).reshape(N, num_heads * head_dim)
    assert jnp.allclose(o, o_ref, atol=2e-3, rtol=2e-3)

    print("KERNEL_OK")
</pallas_src>

<mosaic_0001>
module attributes {stable_mosaic.version = 11 : i64} {
  func.func @_store_kvcache_kernel(%arg0: i32, %arg1: memref<512xi32, #tpu.memory_space<smem>>, %arg2: memref<128x2x128xf32, #tpu.memory_space<vmem>>, %arg3: memref<128x2x128xf32, #tpu.memory_space<vmem>>, %arg4: memref<1024x2x128xf32, #tpu.memory_space<any>>, %arg5: memref<1024x2x128xf32, #tpu.memory_space<any>>, %arg6: memref<1024x2x128xf32, #tpu.memory_space<any>>, %arg7: memref<1024x2x128xf32, #tpu.memory_space<any>>, %arg8: memref<2x!tpu.dma_semaphore, #tpu.memory_space<semaphore_mem>>, %arg9: memref<1xi32, #tpu.memory_space<smem>>) attributes {dimension_semantics = [#tpu.dimension_semantics<parallel>], iteration_bounds = array<i64: 4>, scalar_prefetch = 1 : i64, scratch_operands = 2 : i64, tpu.core_type = #tpu.core_type<tc>, window_params = [{transform_indices = @transform_0, window_bounds = array<i64: 128, 2, 128>}, {transform_indices = @transform_1, window_bounds = array<i64: 128, 2, 128>}, {}, {}, {}, {}]} {
    %c0_i32 = arith.constant 0 : i32
    %c0 = arith.constant 0 : index
    %0 = memref.load %arg9[%c0] : memref<1xi32, #tpu.memory_space<smem>>
    memref.store %c0_i32, %arg9[%c0] : memref<1xi32, #tpu.memory_space<smem>>
    %c0_i32_0 = arith.constant 0 : i32
    %c128_i32 = arith.constant 128 : i32
    %1 = arith.addi %c0_i32_0, %c128_i32 : i32
    %c1_i32 = arith.constant 1 : i32
    scf.for %arg10 = %c0_i32_0 to %1 step %c1_i32  : i32 {
      %c1_i32_6 = arith.constant 1 : i32
      %5 = arith.muli %arg10, %c1_i32_6 : i32
      %c0_i32_7 = arith.constant 0 : i32
      %6 = arith.addi %c0_i32_7, %5 : i32
      %c128_i32_8 = arith.constant 128 : i32
      %7 = arith.muli %arg0, %c128_i32_8 : i32
      %8 = arith.addi %7, %6 : i32
      %c511_i32 = arith.constant 511 : i32
      %9 = arith.minsi %8, %c511_i32 : i32
      %10 = arith.index_cast %9 : i32 to index
      %11 = memref.load %arg1[%10] : memref<512xi32, #tpu.memory_space<smem>>
      %c512_i32 = arith.constant 512 : i32
      %12 = arith.cmpi slt, %8, %c512_i32 : i32
      %c0_i32_9 = arith.constant 0 : i32
      %13 = arith.cmpi sge, %11, %c0_i32_9 : i32
      %14 = arith.andi %12, %13 : i1
      %15 = arith.extui %14 : i1 to i32
      %c0_i32_10 = arith.constant 0 : i32
      %16 = arith.cmpi ne, %15, %c0_i32_10 : i32
      scf.if %16 {
        %c0_i32_11 = arith.constant 0 : i32
        %c0_i32_12 = arith.constant 0 : i32
        %c0_i32_13 = arith.constant 0 : i32
        %17 = tpu.memref_slice %arg2[%6, %c0_i32_12, %c0_i32_13] : memref<128x2x128xf32, #tpu.memory_space<vmem>> -> memref<1x2x128xf32, #tpu.memory_space<vmem>>
        %18 = tpu.memref_squeeze %17 : memref<1x2x128xf32, #tpu.memory_space<vmem>> -> memref<2x128xf32, #tpu.memory_space<vmem>>
        %c0_i32_14 = arith.constant 0 : i32
        %c0_i32_15 = arith.constant 0 : i32
        %19 = tpu.memref_slice %arg6[%11, %c0_i32_14, %c0_i32_15] : memref<1024x2x128xf32, #tpu.memory_space<any>> -> memref<1x2x128xf32, #tpu.memory_space<any>>
        %20 = tpu.memref_squeeze %19 : memref<1x2x128xf32, #tpu.memory_space<any>> -> memref<2x128xf32, #tpu.memory_space<any>>
        %21 = tpu.memref_slice %arg8[%c0_i32_11] : memref<2x!tpu.dma_semaphore, #tpu.memory_space<semaphore_mem>> -> memref<1x!tpu.dma_semaphore, #tpu.memory_space<semaphore_mem>>
        %22 = tpu.memref_squeeze %21 : memref<1x!tpu.dma_semaphore, #tpu.memory_space<semaphore_mem>> -> memref<!tpu.dma_semaphore, #tpu.memory_space<semaphore_mem>>
        tpu.enqueue_dma source(%18 : memref<2x128xf32, #tpu.memory_space<vmem>>) target(%20 : memref<2x128xf32, #tpu.memory_space<any>>) target_semaphore(%22 : memref<!tpu.dma_semaphore, #tpu.memory_space<semaphore_mem>>)
        %c1_i32_16 = arith.constant 1 : i32
        %c0_i32_17 = arith.constant 0 : i32
        %c0_i32_18 = arith.constant 0 : i32
        %23 = tpu.memref_slice %arg3[%6, %c0_i32_17, %c0_i32_18] : memref<128x2x128xf32, #tpu.memory_space<vmem>> -> memref<1x2x128xf32, #tpu.memory_space<vmem>>
        %24 = tpu.memref_squeeze %23 : memref<1x2x128xf32, #tpu.memory_space<vmem>> -> memref<2x128xf32, #tpu.memory_space<vmem>>
        %c0_i32_19 = arith.constant 0 : i32
        %c0_i32_20 = arith.constant 0 : i32
        %25 = tpu.memref_slice %arg7[%11, %c0_i32_19, %c0_i32_20] : memref<1024x2x128xf32, #tpu.memory_space<any>> -> memref<1x2x128xf32, #tpu.memory_space<any>>
        %26 = tpu.memref_squeeze %25 : memref<1x2x128xf32, #tpu.memory_space<any>> -> memref<2x128xf32, #tpu.memory_space<any>>
        %27 = tpu.memref_slice %arg8[%c1_i32_16] : memref<2x!tpu.dma_semaphore, #tpu.memory_space<semaphore_mem>> -> memref<1x!tpu.dma_semaphore, #tpu.memory_space<semaphore_mem>>
        %28 = tpu.memref_squeeze %27 : memref<1x!tpu.dma_semaphore, #tpu.memory_space<semaphore_mem>> -> memref<!tpu.dma_semaphore, #tpu.memory_space<semaphore_mem>>
        tpu.enqueue_dma source(%24 : memref<2x128xf32, #tpu.memory_space<vmem>>) target(%26 : memref<2x128xf32, #tpu.memory_space<any>>) target_semaphore(%28 : memref<!tpu.dma_semaphore, #tpu.memory_space<semaphore_mem>>)
        %c0_21 = arith.constant 0 : index
        %29 = memref.load %arg9[%c0_21] : memref<1xi32, #tpu.memory_space<smem>>
        %c1_i32_22 = arith.constant 1 : i32
        %30 = arith.addi %29, %c1_i32_22 : i32
        %c0_23 = arith.constant 0 : index
        %31 = memref.load %arg9[%c0_23] : memref<1xi32, #tpu.memory_space<smem>>
        memref.store %30, %arg9[%c0_23] : memref<1xi32, #tpu.memory_space<smem>>
      } else {
      }
    }
    %c128_i32_1 = arith.constant 128 : i32
    %c0_2 = arith.constant 0 : index
    %2 = memref.load %arg9[%c0_2] : memref<1xi32, #tpu.memory_space<smem>>
    %c0_i32_3 = arith.constant 0 : i32
    %c0_i32_4 = arith.constant 0 : i32
    %3 = arith.subi %2, %c0_i32_4 : i32
    %4 = arith.addi %c0_i32_4, %3 : i32
    %c1_i32_5 = arith.constant 1 : i32
    scf.for %arg10 = %c0_i32_4 to %4 step %c1_i32_5  : i32 {
      %c0_i32_6 = arith.constant 0 : i32
      %c0_i32_7 = arith.constant 0 : i32
      %c0_i32_8 = arith.constant 0 : i32
      %c0_i32_9 = arith.constant 0 : i32
      %c0_i32_10 = arith.constant 0 : i32
      %5 = tpu.memref_slice %arg2[%c0_i32_6, %c0_i32_9, %c0_i32_10] : memref<128x2x128xf32, #tpu.memory_space<vmem>> -> memref<1x2x128xf32, #tpu.memory_space<vmem>>
      %6 = tpu.memref_squeeze %5 : memref<1x2x128xf32, #tpu.memory_space<vmem>> -> memref<2x128xf32, #tpu.memory_space<vmem>>
      %c0_i32_11 = arith.constant 0 : i32
      %c0_i32_12 = arith.constant 0 : i32
      %7 = tpu.memref_slice %arg6[%c0_i32_7, %c0_i32_11, %c0_i32_12] : memref<1024x2x128xf32, #tpu.memory_space<any>> -> memref<1x2x128xf32, #tpu.memory_space<any>>
      %8 = tpu.memref_squeeze %7 : memref<1x2x128xf32, #tpu.memory_space<any>> -> memref<2x128xf32, #tpu.memory_space<any>>
      %9 = tpu.memref_slice %arg8[%c0_i32_8] : memref<2x!tpu.dma_semaphore, #tpu.memory_space<semaphore_mem>> -> memref<1x!tpu.dma_semaphore, #tpu.memory_space<semaphore_mem>>
      %10 = tpu.memref_squeeze %9 : memref<1x!tpu.dma_semaphore, #tpu.memory_space<semaphore_mem>> -> memref<!tpu.dma_semaphore, #tpu.memory_space<semaphore_mem>>
      tpu.wait_dma2 semaphore(%10 : memref<!tpu.dma_semaphore, #tpu.memory_space<semaphore_mem>>) src(%6 : memref<2x128xf32, #tpu.memory_space<vmem>>) dst(%8 : memref<2x128xf32, #tpu.memory_space<any>>)
      %c0_i32_13 = arith.constant 0 : i32
      %c0_i32_14 = arith.constant 0 : i32
      %c1_i32_15 = arith.constant 1 : i32
      %c0_i32_16 = arith.constant 0 : i32
      %c0_i32_17 = arith.constant 0 : i32
      %11 = tpu.memref_slice %arg3[%c0_i32_13, %c0_i32_16, %c0_i32_17] : memref<128x2x128xf32, #tpu.memory_space<vmem>> -> memref<1x2x128xf32, #tpu.memory_space<vmem>>
      %12 = tpu.memref_squeeze %11 : memref<1x2x128xf32, #tpu.memory_space<vmem>> -> memref<2x128xf32, #tpu.memory_space<vmem>>
      %c0_i32_18 = arith.constant 0 : i32
      %c0_i32_19 = arith.constant 0 : i32
      %13 = tpu.memref_slice %arg7[%c0_i32_14, %c0_i32_18, %c0_i32_19] : memref<1024x2x128xf32, #tpu.memory_space<any>> -> memref<1x2x128xf32, #tpu.memory_space<any>>
      %14 = tpu.memref_squeeze %13 : memref<1x2x128xf32, #tpu.memory_space<any>> -> memref<2x128xf32, #tpu.memory_space<any>>
      %15 = tpu.memref_slice %arg8[%c1_i32_15] : memref<2x!tpu.dma_semaphore, #tpu.memory_space<semaphore_mem>> -> memref<1x!tpu.dma_semaphore, #tpu.memory_space<semaphore_mem>>
      %16 = tpu.memref_squeeze %15 : memref<1x!tpu.dma_semaphore, #tpu.memory_space<semaphore_mem>> -> memref<!tpu.dma_semaphore, #tpu.memory_space<semaphore_mem>>
      tpu.wait_dma2 semaphore(%16 : memref<!tpu.dma_semaphore, #tpu.memory_space<semaphore_mem>>) src(%12 : memref<2x128xf32, #tpu.memory_space<vmem>>) dst(%14 : memref<2x128xf32, #tpu.memory_space<any>>)
    }
    return
  }
  func.func @transform_0(%arg0: i32, %arg1: memref<512xi32, #tpu.memory_space<smem>>) -> (i32, i32, i32) {
    %c0_i32 = arith.constant 0 : i32
    %c0_i32_0 = arith.constant 0 : i32
    %c0_i32_1 = arith.constant 0 : i32
    return %arg0, %c0_i32, %c0_i32_0 : i32, i32, i32
  }
  func.func @transform_1(%arg0: i32, %arg1: memref<512xi32, #tpu.memory_space<smem>>) -> (i32, i32, i32) {
    %c0_i32 = arith.constant 0 : i32
    %c0_i32_0 = arith.constant 0 : i32
    %c0_i32_1 = arith.constant 0 : i32
    return %arg0, %c0_i32, %c0_i32_0 : i32, i32, i32
  }
}

</mosaic_0001>

<llo_original>
// kernel: tpu_custom_call.1
$region0: #{tpu_custom_call.1}
  #allocation0 [shape = 'u32[]', space=smem, size = 0x4, offset = 0x4, fixed_abs, tag = 'smem constant byte address 0x4 - core index']
  #allocation1 [shape = 'u32[144,128]{1,0:T(1,128)}', space=vmem, size = 0x12000, scoped, tag = 'internal scratch']
  #allocation2 [shape = 's32[2]{0}', space=sflag, size = 0x8, scoped, tag = 'scratch operand']
  #allocation3 [shape = 's32[1]{0:T(128)}', space=smem, size = 0x200, scoped, tag = 'scratch operand']
  #allocation4 [shape = 's32[1]{0}', space=sflag, size = 0x4, scoped, tag = 'scoped memory for tpu_custom_call.1']
  #allocation5 [shape = 'u8[2048]{0}', space=smem, size = 0x800, scoped, tag = 'prefetched SMEM operand 0']
  #allocation6 [shape = 's32[]', space=sflag, size = 0x4, offset = 0, fixed_abs, tag = 'sflag constant byte address 0x0 - dummy sync flag']
  #allocation7 [shape = 's32[]', space=sflag, size = 0x4, offset = 0, fixed_abs, tag = 'sflag constant byte address 0x0 - dummy sync flag']
  #allocation8 [shape = 'u32[]', space=smem, size = 0x4, offset = 0x44, fixed_abs, tag = 'smem constant byte address 0x44 - assertion arg 0']
  #allocation9 [shape = 'u32[]', space=smem, size = 0x4, offset = 0x48, fixed_abs, tag = 'smem constant byte address 0x48 - assertion arg 1']
  #allocation10 [shape = 's32[]', space=sflag, size = 0x4, offset = 0, fixed_abs, tag = 'sflag constant byte address 0x0 - dummy sync flag']
  #allocation11 [shape = 's32[]', space=sflag, size = 0x4, offset = 0, fixed_abs, tag = 'sflag constant byte address 0x0 - dummy sync flag']
  %s0 = inlined_call_operand.vmem [shape: s32[512], index: 0, kind: input, shape index: {}]
  %s1 = inlined_call_operand.vmem [shape: f32[512,2,128], index: 1, kind: input, shape index: {}]
  %s2 = inlined_call_operand.vmem [shape: f32[512,2,128], index: 2, kind: input, shape index: {}]
  %s3 = inlined_call_operand.hbm [shape: f32[1024,2,128], index: 3, kind: input, shape index: {}, may-alias: {3,5}]
  %s4 = inlined_call_operand.hbm [shape: f32[1024,2,128], index: 4, kind: input, shape index: {}, may-alias: {4,6}]
  %s5 = inlined_call_operand.hbm [shape: f32[1024,2,128], index: 5, kind: output, shape index: {0}, may-alias: {3,5}]
  %s6 = inlined_call_operand.hbm [shape: f32[1024,2,128], index: 6, kind: output, shape index: {1}, may-alias: {4,6}]
  %7 = xla_tuple %s5, %s6
  %s8 = sld [smem:[#allocation0]]
  $region55: #{tpu_custom_call.1} parent=0
    _
  %s10 = ssub.s32 1, %s8
  %s11 = scalar_select 0, %s10, %s8
  %s12 = sshll.u32 %s0, 4
  %s13 = int_to_ptr.vmem [resolvable:$true] %s12
  %15 = dma.vmem_to_smem %s13, 64, [#allocation5], [#allocation4]
  %16 = dma.done [#allocation4], 64
  %17 = sfence
  loop: start=0, step=1, limit=5
  $region2: #{tpu_custom_call.1} parent=0 // loop_pre_header
    _
  $region3: #{tpu_custom_call.1} parent=0 // loop_header
    %s19 = sphi 0, %s23
    %p20 = scmp.ge.s32.totalorder %s19, 5
    %s28 = sphi 0, %s30
    %s31 = sphi 0, %s28
    %s41 = sphi 0, %s31
    %s47 = sphi 0, %s49
    %s50 = sphi 0, %s47
    %s60 = sphi 0, %s50
  $region4: #{tpu_custom_call.1} parent=0 // loop_header_branch
    %22 = sbr.rel (%p20) target = $region8
  $region5: #{tpu_custom_call.1} parent=0 // loop_body
    %s24 = ssub.s32 %s19, 1
    %s25 = sadd.s32 %s19, 1
    %s26 = ssub.s32 %s19, %s25
    %p27 = scmp.eq.s32.totalorder %s26, 0
    %s29 = sadd.s32 %s28, 1
    %s30 = scalar_select %p27, %s28, %s29
    %p32 = pneg %p27
    %p33 = scmp.eq.s32.totalorder %s19, 3
    %p34 = por %p32, %p33
    %p35 = scmp.ne.s32.totalorder %s28, %s31
    %p36 = scmp.eq.s32.totalorder %s19, 0
    %p37 = por %p35, %p36
    %p38 = scmp.ne.s32.totalorder %s28, %s31
    %p39 = scmp.eq.s32.totalorder %s24, 3
    %p40 = por %p38, %p39
    %p42 = scmp.ne.s32.totalorder %s31, %s41
    %p43 = scmp.eq.s32.totalorder %s24, 0
    %p44 = por %p42, %p43
    %s45 = ssub.s32 %s19, %s25
    %p46 = scmp.eq.s32.totalorder %s45, 0
    %s48 = sadd.s32 %s47, 1
    %s49 = scalar_select %p46, %s47, %s48
    %p51 = pneg %p46
    %p52 = scmp.eq.s32.totalorder %s19, 3
    %p53 = por %p51, %p52
    %p54 = scmp.ne.s32.totalorder %s47, %s50
    %p55 = scmp.eq.s32.totalorder %s19, 0
    %p56 = por %p54, %p55
    %p57 = scmp.ne.s32.totalorder %s47, %s50
    %p58 = scmp.eq.s32.totalorder %s24, 3
    %p59 = por %p57, %p58
    %p61 = scmp.ne.s32.totalorder %s50, %s60
    %p62 = scmp.eq.s32.totalorder %s24, 0
    %p63 = por %p61, %p62
    %p64 = scmp.le.s32.totalorder 1, %s19
    // Predicated region
    $region9: #{tpu_custom_call.1} parent=5 // pred_check
      %p65 = pneg %p64
    $region10: #{tpu_custom_call.1} parent=5 // pred_check_branch
      %67 = sbr.rel (%p65) target = $region12
    $region11: #{tpu_custom_call.1} parent=5 // pred_region
      %s68 = ssub.s32 %s19, 1
    $region12: #{tpu_custom_call.1} parent=5 // pred_fallthru
      _
    %p69 = scmp.lt.s32.totalorder %s19, 4
    // Predicated region
    $region13: #{tpu_custom_call.1} parent=5 // pred_check
      %p70 = pneg %p69
    $region14: #{tpu_custom_call.1} parent=5 // pred_check_branch
      %72 = sbr.rel (%p70) target = $region16
    $region15: #{tpu_custom_call.1} parent=5 // pred_region
      // Predicated region
      $region17: #{tpu_custom_call.1} parent=15 // pred_check
        %p73 = pneg %p37
      $region18: #{tpu_custom_call.1} parent=15 // pred_check_branch
        %75 = sbr.rel (%p73) target = $region20
      $region19: #{tpu_custom_call.1} parent=15 // pred_region
        %s76 = smul.u32 128, %s19
        %p77 = scmp.lt.s32.totalorder %s76, 511
        %s78 = scalar_select %p77, %s76, 511
        %s79 = smul.addr %s78, 2
        %s80 = scalar_lea.vmem %s1, %s79
        %s81 = smul.u32 128, %s19
      $region20: #{tpu_custom_call.1} parent=15 // pred_fallthru
        _
      // Predicated region
      $region21: #{tpu_custom_call.1} parent=15 // pred_check
        %p82 = pneg %p56
      $region22: #{tpu_custom_call.1} parent=15 // pred_check_branch
        %84 = sbr.rel (%p82) target = $region24
      $region23: #{tpu_custom_call.1} parent=15 // pred_region
        %s85 = smul.u32 128, %s19
        %p86 = scmp.lt.s32.totalorder %s85, 511
        %s87 = scalar_select %p86, %s85, 511
        %s88 = smul.addr %s87, 2
        %s89 = scalar_lea.vmem %s2, %s88
        %s90 = smul.u32 128, %s19
      $region24: #{tpu_custom_call.1} parent=15 // pred_fallthru
        _
    $region16: #{tpu_custom_call.1} parent=5 // pred_fallthru
      _
    %p91 = scmp.le.s32.totalorder 1, %s19
    // Predicated region
    $region25: #{tpu_custom_call.1} parent=5 // pred_check
      %p92 = pneg %p91
    $region26: #{tpu_custom_call.1} parent=5 // pred_check_branch
      %94 = sbr.rel (%p92) target = $region28
    $region27: #{tpu_custom_call.1} parent=5 // pred_region
      %s95 = ssub.s32 %s19, 1
      %s96 = smul.u32 128, %s24
      %p97 = scmp.lt.s32.totalorder %s96, 511
      %s98 = scalar_select %p97, %s96, 511
      %s99 = smul.addr %s98, 2
      %s100 = scalar_lea.vmem %s1, %s99
      %p101 = pneg %p44
      %p102 = pneg %p40
      %s103 = smul.u32 128, %s24
      %p104 = scmp.lt.s32.totalorder %s103, 511
      %s105 = scalar_select %p104, %s103, 511
      %s106 = smul.addr %s105, 2
      %s107 = scalar_lea.vmem %s2, %s106
      %p108 = pneg %p63
      %p109 = pneg %p59
      %s110 = smul.u32 128, %s24
      %p111 = scmp.lt.s32.totalorder %s110, 511
      %s112 = scalar_select %p111, %s110, 511
      %s113 = smul.addr %s112, 2
      %s114 = scalar_lea.vmem %s1, %s113
      %s115 = smul.u32 128, %s24
      %s116 = smul.u32 128, %s24
      %p117 = scmp.lt.s32.totalorder %s116, 511
      %s118 = scalar_select %p117, %s116, 511
      %s119 = smul.addr %s118, 2
      %s120 = scalar_lea.vmem %s2, %s119
      %s121 = smul.u32 128, %s24
      %s122 = scalar_lea.smem [#allocation3], 0
      %123 = sst [smem:[%s122]] 0
      loop: start=0, step=1, limit=128
      $region29: #{tpu_custom_call.1} parent=27 // loop_pre_header
        _
      $region30: #{tpu_custom_call.1} parent=27 // loop_header
        %s125 = sphi 0, %s129
        %p126 = scmp.ge.s32.totalorder %s125, 128
      $region31: #{tpu_custom_call.1} parent=27 // loop_header_branch
        %128 = sbr.rel (%p126) target = $region35
      $region32: #{tpu_custom_call.1} parent=27 // loop_body
        %s130 = smul.u32 %s24, 128
        %s131 = sadd.s32 %s130, %s125
        %p132 = scmp.lt.s32.totalorder %s131, 511
        %s133 = scalar_select %p132, %s131, 511
        %s134 = sld [smem:[#allocation5 + %s133]]
        %p135 = scmp.lt.s32.totalorder %s131, 512
        %p136 = scmp.ge.s32.totalorder %s134, 0
        %p137 = pnand %p135, %p136
        %p138 = pneg %p137
        // Predicated region
        $region36: #{tpu_custom_call.1} parent=32 // pred_check
          _
        $region37: #{tpu_custom_call.1} parent=32 // pred_check_branch
          %140 = sbr.rel (%p137) target = $region39
        $region38: #{tpu_custom_call.1} parent=32 // pred_region
          %s141 = smul.u32 %s125, 2
          %s142 = scalar_lea.vmem %s114, %s141
          %s143 = smul.u32 %s134, 2
          %s144 = smul.addr %s143, 16
          %s145 = scalar_lea.hbm %s5, %s144
          // Predicated region
          $region40: #{tpu_custom_call.1} parent=38 // pred_check
            _
          $region41: #{tpu_custom_call.1} parent=38 // pred_check_branch
            %147 = sbr.rel target = $region43
          $region42: #{tpu_custom_call.1} parent=38 // pred_region
            %148 = sst [smem:[#allocation8]] [#allocation7]
            %149 = sst [smem:[#allocation9]] [#allocation6]
          $region43: #{tpu_custom_call.1} parent=38 // pred_fallthru
            _
          %151 = shalt.err (0)
          %s153 = sshll.u32 %s142, 4
          %s154 = int_to_ptr.vmem [resolvable:$true] %s153
          %156 = dma.vmem_to_hbm [thread:$0]  %s154, 32, %s145, [#allocation2]
          %s157 = scalar_lea.vmem %s120, %s141
          %s158 = smul.addr %s143, 16
          %s159 = scalar_lea.hbm %s6, %s158
          %s160 = scalar_lea.sflag [#allocation2], 1
          // Predicated region
          $region44: #{tpu_custom_call.1} parent=38 // pred_check
            _
          $region45: #{tpu_custom_call.1} parent=38 // pred_check_branch
            %162 = sbr.rel target = $region47
          $region46: #{tpu_custom_call.1} parent=38 // pred_region
            %163 = sst [smem:[#allocation8]] [#allocation11]
            %164 = sst [smem:[#allocation9]] [#allocation10]
          $region47: #{tpu_custom_call.1} parent=38 // pred_fallthru
            _
          %166 = shalt.err (0)
          %s168 = sshll.u32 %s157, 4
          %s169 = int_to_ptr.vmem [resolvable:$true] %s168
          %171 = dma.vmem_to_hbm [thread:$0]  %s169, 32, %s159, %s160
          %s172 = sld [smem:[#allocation3]]
          %s173 = sadd.s32 %s172, 1
          %174 = sst [smem:[%s122]] %s173
        $region39: #{tpu_custom_call.1} parent=32 // pred_fallthru
          _
      $region33: #{tpu_custom_call.1} parent=27 // loop_footer
        %s129 = sadd.s32 1, %s125
      $region34: #{tpu_custom_call.1} parent=27 // loop_footer_branch
        %124 = sbr.rel target = $region30
      $region35: #{tpu_custom_call.1} parent=27 // loop_exit
        _
      %s175 = sld [smem:[#allocation3]]
      // While loop
      $region48: #{tpu_custom_call.1} parent=27 // loop_pre_header
        _
      $region49: #{tpu_custom_call.1} parent=27 // loop_header
        %s177 = sphi 0, %s179
        %p178 = scmp.ge.s32.totalorder %s177, %s175
      $region50: #{tpu_custom_call.1} parent=27 // loop_header_branch
        %181 = sbr.rel (%p178) target = $region54
      $region51: #{tpu_custom_call.1} parent=27 // loop_body
        %s182 = smul.u32 2, 1
        %s183 = sshll.u32 %s182, 4
        %184 = dma.done [#allocation2], %s183
        %s185 = scalar_lea.sflag [#allocation2], 1
        %s186 = sshll.u32 %s182, 4
        %187 = dma.done %s185, %s186
      $region52: #{tpu_custom_call.1} parent=27 // loop_footer
        %s179 = sadd.s32 %s177, 1
      $region53: #{tpu_custom_call.1} parent=27 // loop_footer_branch
        %176 = sbr.rel target = $region49
      $region54: #{tpu_custom_call.1} parent=27 // loop_exit
        _
    $region28: #{tpu_custom_call.1} parent=5 // pred_fallthru
      _
  $region6: #{tpu_custom_call.1} parent=0 // loop_footer
    %s23 = sadd.s32 1, %s19
  $region7: #{tpu_custom_call.1} parent=0 // loop_footer_branch
    %18 = sbr.rel target = $region3
  $region8: #{tpu_custom_call.1} parent=0 // loop_exit
    _
  %188 = vsyncmov [#allocation2]
  %s189 = vpop.sfrf %188
  %p190 = scmp.eq.s32.totalorder %s189, 0
  %p191 = pneg %p190
  %193 = shalt.err (%p191)
  %s194 = scalar_lea.sflag [#allocation2], 1
  %195 = vsyncmov %s194
  %s196 = vpop.sfrf %195
  %p197 = scmp.eq.s32.totalorder %s196, 0
  %p198 = pneg %p197
  %200 = shalt.err (%p198)

</llo_original>
